<compile_context>
chip_gen: v6e
topology: v6e:2x2x1
jax: 0.10.0
libtpu: 0.0.40
codegen_flags: <defaults>
</compile_context>

<pallas_src>
from functools import partial

import jax
import jax.numpy as jnp
from jax.experimental import pallas as pl
from jax.experimental.pallas import tpu as pltpu


def _round_up(a, m):
    return ((a + m - 1) // m) * m


def _dense_kernel(xt_ref, w1_ref, b1_ref, w2_ref, b2_ref, o_ref, *, act_dtype):
    # Matmul #1 (MXU): [nodes, A] @ [A, tb] -> [nodes, tb], f32 accumulate.
    h = jnp.dot(w1_ref[...], xt_ref[...], preferred_element_type=jnp.float32)
    h = h + b1_ref[...].astype(jnp.float32)          # bias broadcast over lanes
    # Tanh on the EUP. act_dtype=f32 by default (exact module semantics);
    # bf16 on v6e/v7x if the EUP ever becomes the binding unit.
    h = jnp.tanh(h.astype(act_dtype))
    # Matmul #2 (MXU): [A, nodes] @ [nodes, tb] -> [A, tb], f32 accumulate.
    y = jnp.dot(w2_ref[...], h.astype(w2_ref.dtype),
                preferred_element_type=jnp.float32)
    y = y + b2_ref[...].astype(jnp.float32)
    o_ref[...] = y.astype(o_ref.dtype)


def dense_layer(x, w1, b1, w2, b2, *, batch_tile=32768, no_grid_cutoff=2048,
                activation_dtype=jnp.float32):
    """Fused Linear -> Tanh -> Linear (PyTorch DenseLayer.forward).

    x:  [B, num_assets]
    w1: [nodes, num_assets]   (= linear1.weight, [out, in])
    b1: [nodes]               (= linear1.bias)
    w2: [num_assets, nodes]   (= linear2.weight)
    b2: [num_assets]          (= linear2.bias)
    returns [B, num_assets]
    """
    B, num_assets = x.shape
    nodes = w1.shape[0]
    assert w1.shape == (nodes, num_assets), w1.shape
    assert w2.shape == (num_assets, nodes), w2.shape

    # Layout plumbing in the wrapper: batch on the lane axis.
    xt = x.T                               # [num_assets, B]
    b1c = b1.reshape(nodes, 1)             # column bias, broadcasts over lanes
    b2c = b2.reshape(num_assets, 1)

    kernel = partial(_dense_kernel, act_dtype=activation_dtype)
    out_t_shape = jax.ShapeDtypeStruct((num_assets, B), x.dtype)

    # ---- Small batch: single invocation, whole arrays in VMEM, no grid. ----
    if B <= no_grid_cutoff:
        out_t = pl.pallas_call(kernel, out_shape=out_t_shape)(
            xt, w1, b1c, w2, b2c)
        return out_t.T

    # ---- Large batch: tile the (lane) batch axis only; weights resident. ----
    assert batch_tile % 128 == 0, "batch_tile must be a multiple of 128"
    # Guarantee >= 2 grid steps so the parallel axis shards over v7x's 2 TCs.
    tb = max(128, min(batch_tile, _round_up(pl.cdiv(B, 2), 128)))
    grid = (pl.cdiv(B, tb),)

    out_t = pl.pallas_call(
        kernel,
        out_shape=out_t_shape,
        grid=grid,
        in_specs=[
            pl.BlockSpec((num_assets, tb), lambda i: (0, i)),     # x^T batch-tiled
            pl.BlockSpec((nodes, num_assets), lambda i: (0, 0)),  # w1 resident
            pl.BlockSpec((nodes, 1), lambda i: (0, 0)),           # b1 resident
            pl.BlockSpec((num_assets, nodes), lambda i: (0, 0)),  # w2 resident
            pl.BlockSpec((num_assets, 1), lambda i: (0, 0)),      # b2 resident
        ],
        out_specs=pl.BlockSpec((num_assets, tb), lambda i: (0, i)),
        compiler_params=pltpu.CompilerParams(
            dimension_semantics=("parallel",)),  # independent batch tiles
    )(xt, w1, b1c, w2, b2c)
    return out_t.T


def reference(x, w1, b1, w2, b2):
    h = jnp.tanh(x @ w1.T + b1)
    return h @ w2.T + b2


if __name__ == "__main__":
    # Module config: DenseLayer(num_assets=4, nodes=32).
    num_assets, nodes, batch = 4, 32, 8

    key = jax.random.PRNGKey(0)
    k_x, k_w1, k_b1, k_w2, k_b2, k_xl = jax.random.split(key, 6)

    # Deterministic init mimicking nn.Linear's uniform(-1/sqrt(fan_in), ...),
    # weights in PyTorch [out, in] layout.
    lim1 = 1.0 / (num_assets ** 0.5)
    lim2 = 1.0 / (nodes ** 0.5)
    w1 = jax.random.uniform(k_w1, (nodes, num_assets), jnp.float32, -lim1, lim1)
    b1 = jax.random.uniform(k_b1, (nodes,), jnp.float32, -lim1, lim1)
    w2 = jax.random.uniform(k_w2, (num_assets, nodes), jnp.float32, -lim2, lim2)
    b2 = jax.random.uniform(k_b2, (num_assets,), jnp.float32, -lim2, lim2)

    # --- Small-batch path (no grid) ---
    x = jax.random.normal(k_x, (batch, num_assets), dtype=jnp.float32)
    out = dense_layer(x, w1, b1, w2, b2)
    jax.block_until_ready(out)
    ref = reference(x, w1, b1, w2, b2)
    assert out.shape == (batch, num_assets)
    assert jnp.allclose(out, ref, atol=1e-4, rtol=1e-4), "small-batch mismatch"

    # --- Large-batch path (lane-dense batch tiling, >=2 grid steps) ---
    big_batch = 4096
    x_big = jax.random.normal(k_xl, (big_batch, num_assets), dtype=jnp.float32)
    out_big = dense_layer(x_big, w1, b1, w2, b2)
    jax.block_until_ready(out_big)
    ref_big = reference(x_big, w1, b1, w2, b2)
    assert out_big.shape == (big_batch, num_assets)
    assert jnp.allclose(out_big, ref_big, atol=1e-4, rtol=1e-4), "tiled mismatch"

    print("KERNEL_OK")
</pallas_src>

<mosaic_0001>
module attributes {stable_mosaic.version = 11 : i64} {
  func.func @_dense_kernel(%arg0: memref<4x8xf32, #tpu.memory_space<vmem>>, %arg1: memref<32x4xf32, #tpu.memory_space<vmem>>, %arg2: memref<32x1xf32, #tpu.memory_space<vmem>>, %arg3: memref<4x32xf32, #tpu.memory_space<vmem>>, %arg4: memref<4x1xf32, #tpu.memory_space<vmem>>, %arg5: memref<4x8xf32, #tpu.memory_space<vmem>>) attributes {dimension_semantics = [], scalar_prefetch = 0 : i64, scratch_operands = 0 : i64, tpu.core_type = #tpu.core_type<tc>} {
    %c0 = arith.constant 0 : index
    %c0_0 = arith.constant 0 : index
    %0 = vector.load %arg1[%c0, %c0_0] : memref<32x4xf32, #tpu.memory_space<vmem>>, vector<32x4xf32>
    %c0_1 = arith.constant 0 : index
    %c0_2 = arith.constant 0 : index
    %1 = vector.load %arg0[%c0_1, %c0_2] : memref<4x8xf32, #tpu.memory_space<vmem>>, vector<4x8xf32>
    %cst = arith.constant dense<0.000000e+00> : vector<32x8xf32>
    %2 = tpu.matmul %0, %1, %cst {dimension_numbers = #tpu.dot_dimension_numbers<[1], [0], [0], [1], [0, 0, 1, 1], [], []>} : vector<32x4xf32>, vector<4x8xf32>, vector<32x8xf32> -> vector<32x8xf32>
    %c0_3 = arith.constant 0 : index
    %c0_4 = arith.constant 0 : index
    %3 = vector.load %arg2[%c0_3, %c0_4] : memref<32x1xf32, #tpu.memory_space<vmem>>, vector<32x1xf32>
    %4 = vector.broadcast %3 : vector<32x1xf32> to vector<32x8xf32>
    %5 = arith.addf %2, %4 : vector<32x8xf32>
    %6 = math.tanh %5 : vector<32x8xf32>
    %c0_5 = arith.constant 0 : index
    %c0_6 = arith.constant 0 : index
    %7 = vector.load %arg3[%c0_5, %c0_6] : memref<4x32xf32, #tpu.memory_space<vmem>>, vector<4x32xf32>
    %cst_7 = arith.constant dense<0.000000e+00> : vector<4x8xf32>
    %8 = tpu.matmul %7, %6, %cst_7 {dimension_numbers = #tpu.dot_dimension_numbers<[1], [0], [0], [1], [0, 0, 1, 1], [], []>} : vector<4x32xf32>, vector<32x8xf32>, vector<4x8xf32> -> vector<4x8xf32>
    %c0_8 = arith.constant 0 : index
    %c0_9 = arith.constant 0 : index
    %9 = vector.load %arg4[%c0_8, %c0_9] : memref<4x1xf32, #tpu.memory_space<vmem>>, vector<4x1xf32>
    %10 = vector.broadcast %9 : vector<4x1xf32> to vector<4x8xf32>
    %11 = arith.addf %8, %10 : vector<4x8xf32>
    %c0_10 = arith.constant 0 : index
    %c0_11 = arith.constant 0 : index
    %12 = vector.load %arg5[%c0_10, %c0_11] : memref<4x8xf32, #tpu.memory_space<vmem>>, vector<4x8xf32>
    tpu.vector_store %arg5[%c0_10, %c0_11], %11 {strides = array<i32>} : memref<4x8xf32, #tpu.memory_space<vmem>>, vector<4x8xf32>,
    return
  }
}

</mosaic_0001>

<llo_original>
// kernel: tpu_custom_call.1
$region0: #{tpu_custom_call.1}
  #allocation0 [shape = 'u32[]', space=smem, size = 0x4, offset = 0x4, fixed_abs, tag = 'smem constant byte address 0x4 - core index']
  #allocation1 [shape = 'u32[144,128]{1,0:T(1,128)}', space=vmem, size = 0x12000, scoped, tag = 'internal scratch']
  %s0 = inlined_call_operand.vmem [shape: f32[4,8], index: 0, kind: input, shape index: {}]
  %s1 = inlined_call_operand.vmem [shape: f32[32,4], index: 1, kind: input, shape index: {}]
  %s2 = inlined_call_operand.vmem [shape: f32[32,1], index: 2, kind: input, shape index: {}]
  %s3 = inlined_call_operand.vmem [shape: f32[4,32], index: 3, kind: input, shape index: {}]
  %s4 = inlined_call_operand.vmem [shape: f32[4,1], index: 4, kind: input, shape index: {}]
  %s5 = inlined_call_operand.hbm [shape: f32[4,8], index: 5, kind: output, shape index: {}]
  %s6 = sld [smem:[#allocation0]]
  $region30: #{tpu_custom_call.1} parent=0
    _
  %s8 = ssub.s32 1, %s6
  %s9 = scalar_select 0, %s8, %s6
  $region1: #{tpu_custom_call.1} parent=0
    #allocation2 [shape = 'u8[2048]{0}', space=vmem, size = 0x800, scoped, tag = 'output window, operand 0, single buffered']
    #allocation3 [shape = 's32[1]{0}', space=sflag, size = 0x4, scoped, tag = 'scoped memory for tpu_custom_call.1']
    %10 = vsyncpa [#allocation3], 0
    // Predicated region
    $region2: #{tpu_custom_call.1} parent=1 // pred_check
      _
    $region3: #{tpu_custom_call.1} parent=1 // pred_check_branch
      %12 = sbr.rel (0) target = $region5
    $region4: #{tpu_custom_call.1} parent=1 // pred_region
      _
    $region5: #{tpu_custom_call.1} parent=1 // pred_fallthru
      _
    // Predicated region
    $region6: #{tpu_custom_call.1} parent=1 // pred_check
      _
    $region7: #{tpu_custom_call.1} parent=1 // pred_check_branch
      %14 = sbr.rel (0) target = $region9
    $region8: #{tpu_custom_call.1} parent=1 // pred_region
      _
    $region9: #{tpu_custom_call.1} parent=1 // pred_fallthru
      _
    // Predicated region
    $region10: #{tpu_custom_call.1} parent=1 // pred_check
      _
    $region11: #{tpu_custom_call.1} parent=1 // pred_check_branch
      %16 = sbr.rel (0) target = $region13
    $region12: #{tpu_custom_call.1} parent=1 // pred_region
      _
    $region13: #{tpu_custom_call.1} parent=1 // pred_fallthru
      _
    // Predicated region
    $region14: #{tpu_custom_call.1} parent=1 // pred_check
      _
    $region15: #{tpu_custom_call.1} parent=1 // pred_check_branch
      %18 = sbr.rel (0) target = $region17
    $region16: #{tpu_custom_call.1} parent=1 // pred_region
      _
    $region17: #{tpu_custom_call.1} parent=1 // pred_fallthru
      _
    // Predicated region
    $region18: #{tpu_custom_call.1} parent=1 // pred_check
      _
    $region19: #{tpu_custom_call.1} parent=1 // pred_check_branch
      %20 = sbr.rel (0) target = $region21
    $region20: #{tpu_custom_call.1} parent=1 // pred_region
      _
    $region21: #{tpu_custom_call.1} parent=1 // pred_fallthru
      _
    %v21 = vld [vmem:[%s1] sm:$0xff]
    %v22 = vld [vmem:[%s1 + $0x8] sm:$0xff]
    %v23 = vld [vmem:[%s1 + $0x10] sm:$0xff]
    %v24 = vld [vmem:[%s1 + $0x18] sm:$0xff]
    %v25 = vld [vmem:[%s0] sm:$0xf]
    %v26 = vld [vmem:[%s2] sm:$0xff]
    %v27 = vld [vmem:[%s2 + $0x8] sm:$0xff]
    %v28 = vld [vmem:[%s2 + $0x10] sm:$0xff]
    %v29 = vld [vmem:[%s2 + $0x18] sm:$0xff]
    %31 = vset.pattern.permute.xlu0 0
    %32 = vperm.xlu0 %31, %v26
    %v33 = vpop.permute.xlu0 %32
    %36 = vset.pattern.permute.xlu0 0
    %37 = vperm.xlu0 %36, %v27
    %v38 = vpop.permute.xlu0 %37
    %41 = vset.pattern.permute.xlu0 0
    %42 = vperm.xlu0 %41, %v28
    %v43 = vpop.permute.xlu0 %42
    %46 = vset.pattern.permute.xlu0 0
    %47 = vperm.xlu0 %46, %v29
    %v48 = vpop.permute.xlu0 %47
    %vm50 = vcmask 31744
    %v52 = vsel %vm50, %v21, 0
    %v55 = vsel %vm50, %v22, 0
    %v58 = vsel %vm50, %v23, 0
    %v61 = vsel %vm50, %v24, 0
    %vm63 = vcmask 1043456
    %v65 = vsel %vm63, %v25, 0
    %67 = vmatprep.subr.mxu0 0.0
    %68 = vmatpush1.msra.mxu0 0.0
    %69 = vmatprep.subr.mxu0 0.0
    %70 = vmatpush1.msra.mxu0 0.0
    %71 = vmatprep.subr.mxu0 0.0
    %72 = vmatpush1.msra.mxu0 0.0
    %73 = vmatprep.subr.mxu0 0.0
    %74 = vmatpush1.msra.mxu0 0.0
    %75 = vmatprep.subr.mxu0 0.0
    %76 = vmatpush1.msra.mxu0 0.0
    %77 = vmatprep.subr.mxu0 0.0
    %78 = vmatpush1.msra.mxu0 0.0
    %79 = vmatprep.subr.mxu0 0.0
    %80 = vmatpush1.msra.mxu0 0.0
    %81 = vmatprep.subr.mxu0 0.0
    %82 = vmatpush1.msra.mxu0 0.0
    %83 = vmatprep.subr.mxu0 0.0
    %84 = vmatpush1.msra.mxu0 0.0
    %85 = vmatprep.subr.mxu0 0.0
    %86 = vmatpush1.msra.mxu0 0.0
    %87 = vmatprep.subr.mxu0 0.0
    %88 = vmatpush1.msra.mxu0 0.0
    %89 = vmatprep.subr.mxu0 0.0
    %90 = vmatpush1.msra.mxu0 0.0
    %91 = vmatprep.subr.mxu0 0.0
    %92 = vmatpush1.msra.mxu0 0.0
    %93 = vmatprep.subr.mxu0 0.0
    %94 = vmatpush1.msra.mxu0 0.0
    %95 = vmatprep.subr.mxu0 0.0
    %96 = vmatpush1.msra.mxu0 0.0
    %97 = vmatprep.subr.mxu0 0.0
    %98 = vmatpush1.msra.mxu0 %v65
    %99 = vmatprep.subr.mxu0 0.0
    %100 = vmatpush2.msra.mxu0 0.0
    %101 = vmatprep.subr.mxu0 0.0
    %102 = vmatpush2.msra.mxu0 0.0
    %103 = vmatprep.subr.mxu0 0.0
    %104 = vmatpush2.msra.mxu0 0.0
    %105 = vmatprep.subr.mxu0 0.0
    %106 = vmatpush2.msra.mxu0 0.0
    %107 = vmatprep.subr.mxu0 0.0
    %108 = vmatpush2.msra.mxu0 0.0
    %109 = vmatprep.subr.mxu0 0.0
    %110 = vmatpush2.msra.mxu0 0.0
    %111 = vmatprep.subr.mxu0 0.0
    %112 = vmatpush2.msra.mxu0 0.0
    %113 = vmatprep.subr.mxu0 0.0
    %114 = vmatpush2.msra.mxu0 0.0
    %115 = vmatprep.subr.mxu0 0.0
    %116 = vmatpush2.msra.mxu0 0.0
    %117 = vmatprep.subr.mxu0 0.0
    %118 = vmatpush2.msra.mxu0 0.0
    %119 = vmatprep.subr.mxu0 0.0
    %120 = vmatpush2.msra.mxu0 0.0
    %121 = vmatprep.subr.mxu0 0.0
    %122 = vmatpush2.msra.mxu0 0.0
    %123 = vmatprep.subr.mxu0 0.0
    %124 = vmatpush2.msra.mxu0 0.0
    %125 = vmatprep.subr.mxu0 0.0
    %126 = vmatpush2.msra.mxu0 0.0
    %127 = vmatprep.subr.mxu0 0.0
    %128 = vmatpush2.msra.mxu0 0.0
    %129 = vmatprep.subr.mxu0 0.0
    %130 = vmatpush2.msra.mxu0 0.0
    %131 = vmatprep.mubr.f32.mxu0 0.0
    %132 = vmatmul.mubr.f32.gmra.mxu0 %v52
    %v133 = vpop.f32.mrf.mxu0
    %v134 = vadd.f32 %v33, %v133
    %v135 = vpop.f32.mrf.mxu0
    %136 = vmatprep.mubr.f32.mxu0 0.0
    %137 = vmatmul.mubr.f32.gmra.mxu0 %v55
    %v138 = vpop.f32.mrf.mxu0
    %v139 = vadd.f32 %v38, %v138
    %v140 = vpop.f32.mrf.mxu0
    %141 = vmatprep.mubr.f32.mxu0 0.0
    %142 = vmatmul.mubr.f32.gmra.mxu0 %v58
    %v143 = vpop.f32.mrf.mxu0
    %v144 = vadd.f32 %v43, %v143
    %v145 = vpop.f32.mrf.mxu0
    %146 = vmatprep.mubr.f32.mxu0 0.0
    %147 = vmatmul.mubr.f32.gmra.mxu0 %v61
    %v148 = vpop.f32.mrf.mxu0
    %v149 = vadd.f32 %v48, %v148
    %v150 = vpop.f32.mrf.mxu0
    %151 = vdwg.mxu0
    %v152 = vtanh.pop %v134
    %v153 = vtanh.pop %v139
    %v154 = vtanh.pop %v144
    %v155 = vtanh.pop %v149
    %v156 = vld [vmem:[%s3] sm:$0xf]
    %v157 = vld [vmem:[%s4] sm:$0xf]
    %159 = vset.pattern.permute.xlu0 0
    %160 = vperm.xlu0 %159, %v157
    %v161 = vpop.permute.xlu0 %160
    %vm163 = vcmask 261120
    %v165 = vsel %vm163, %v156, 0
    %167 = vmatprep.subr.mxu0 0.0
    %168 = vmatpush1.msra.mxu0 0.0
    %169 = vmatprep.subr.mxu0 0.0
    %170 = vmatpush1.msra.mxu0 0.0
    %171 = vmatprep.subr.mxu0 0.0
    %172 = vmatpush1.msra.mxu0 0.0
    %173 = vmatprep.subr.mxu0 0.0
    %174 = vmatpush1.msra.mxu0 0.0
    %175 = vmatprep.subr.mxu0 0.0
    %176 = vmatpush1.msra.mxu0 0.0
    %177 = vmatprep.subr.mxu0 0.0
    %178 = vmatpush1.msra.mxu0 0.0
    %179 = vmatprep.subr.mxu0 0.0
    %180 = vmatpush1.msra.mxu0 0.0
    %181 = vmatprep.subr.mxu0 0.0
    %182 = vmatpush1.msra.mxu0 0.0
    %183 = vmatprep.subr.mxu0 0.0
    %184 = vmatpush1.msra.mxu0 0.0
    %185 = vmatprep.subr.mxu0 0.0
    %186 = vmatpush1.msra.mxu0 0.0
    %187 = vmatprep.subr.mxu0 0.0
    %188 = vmatpush1.msra.mxu0 0.0
    %189 = vmatprep.subr.mxu0 0.0
    %190 = vmatpush1.msra.mxu0 0.0
    %191 = vmatprep.subr.mxu0 0.0
    %192 = vmatpush1.msra.mxu0 %v155
    %193 = vmatprep.subr.mxu0 0.0
    %194 = vmatpush1.msra.mxu0 %v154
    %195 = vmatprep.subr.mxu0 0.0
    %196 = vmatpush1.msra.mxu0 %v153
    %197 = vmatprep.subr.mxu0 0.0
    %198 = vmatpush1.msra.mxu0 %v152
    %199 = vmatprep.subr.mxu0 0.0
    %200 = vmatpush2.msra.mxu0 0.0
    %201 = vmatprep.subr.mxu0 0.0
    %202 = vmatpush2.msra.mxu0 0.0
    %203 = vmatprep.subr.mxu0 0.0
    %204 = vmatpush2.msra.mxu0 0.0
    %205 = vmatprep.subr.mxu0 0.0
    %206 = vmatpush2.msra.mxu0 0.0
    %207 = vmatprep.subr.mxu0 0.0
    %208 = vmatpush2.msra.mxu0 0.0
    %209 = vmatprep.subr.mxu0 0.0
    %210 = vmatpush2.msra.mxu0 0.0
    %211 = vmatprep.subr.mxu0 0.0
    %212 = vmatpush2.msra.mxu0 0.0
    %213 = vmatprep.subr.mxu0 0.0
    %214 = vmatpush2.msra.mxu0 0.0
    %215 = vmatprep.subr.mxu0 0.0
    %216 = vmatpush2.msra.mxu0 0.0
    %217 = vmatprep.subr.mxu0 0.0
    %218 = vmatpush2.msra.mxu0 0.0
    %219 = vmatprep.subr.mxu0 0.0
    %220 = vmatpush2.msra.mxu0 0.0
    %221 = vmatprep.subr.mxu0 0.0
    %222 = vmatpush2.msra.mxu0 0.0
    %223 = vmatprep.subr.mxu0 0.0
    %224 = vmatpush2.msra.mxu0 0.0
    %225 = vmatprep.subr.mxu0 0.0
    %226 = vmatpush2.msra.mxu0 0.0
    %227 = vmatprep.subr.mxu0 0.0
    %228 = vmatpush2.msra.mxu0 0.0
    %229 = vmatprep.subr.mxu0 0.0
    %230 = vmatpush2.msra.mxu0 0.0
    %231 = vmatprep.mubr.f32.mxu0 0.0
    %232 = vmatmul.mubr.f32.gmra.mxu0 %v165
    %v233 = vpop.f32.mrf.mxu0
    %v234 = vadd.f32 %v161, %v233
    %v235 = vpop.f32.mrf.mxu0
    %236 = vdwg.mxu0
    %vm237 = vcmask 60416
    %238 = vst.msk [vmem:[#allocation2] sm:$0xf] %vm237, %v234
    // Predicated region
    $region22: #{tpu_custom_call.1} parent=1 // pred_check
      _
    $region23: #{tpu_custom_call.1} parent=1 // pred_check_branch
      %240 = sbr.rel (0) target = $region25
    $region24: #{tpu_custom_call.1} parent=1 // pred_region
      %s242 = ssub.s32 64, 64
      %243 = vsyncadd [#allocation3], %s242
      %s245 = sshll.u32 [#allocation2], 4
      %s246 = int_to_ptr.vmem [resolvable:$true] %s245
      %248 = dma.vmem_to_hbm [thread:$0]  %s246, 64, %s5, [#allocation3]
    $region25: #{tpu_custom_call.1} parent=1 // pred_fallthru
      _
    // Predicated region
    $region26: #{tpu_custom_call.1} parent=1 // pred_check
      _
    $region27: #{tpu_custom_call.1} parent=1 // pred_check_branch
      %250 = sbr.rel (0) target = $region29
    $region28: #{tpu_custom_call.1} parent=1 // pred_region
      %251 = dma.done [#allocation3], 64
    $region29: #{tpu_custom_call.1} parent=1 // pred_fallthru
      _
    %252 = vsyncpa [#allocation3], 1

</llo_original>
